<compile_context>
chip_gen: v7x
topology: tpu7x:2x2x1
jax: 0.10.0
libtpu: 0.0.40
codegen_flags: <defaults>
</compile_context>

<pallas_src>
import functools

import jax
import jax.numpy as jnp
from jax.experimental import pallas as pl
from jax.experimental.pallas import tpu as pltpu

_NUM_CORES = 2      # leading "parallel" axis (v7x megacore); harmless on 1-TC chips
_OUT_ROWS = 8       # per-core partial-sum output block is (8, 128), tiling-aligned


def _siamese_kernel(m1_ref, m2_ref, lab_ref, out_ref, acc_ref, *,
                    loss_type, distance_type, margin, batch_size, block_b,
                    num_tiles, tiles_per_core, need_mask):
    c = pl.program_id(0)            # batch half / core ("parallel")
    t = pl.program_id(1)            # tile within this half ("arbitrary")
    lin = c * tiles_per_core + t    # linear tile index over the whole batch

    @pl.when(t == 0)
    def _():
        acc_ref[0] = 0.0
        acc_ref[1] = 0.0

    m1 = m1_ref[...].astype(jnp.float32)        # (TB, D)
    m2 = m2_ref[...].astype(jnp.float32)        # (TB, D)
    label = lab_ref[...].astype(jnp.float32)    # (TB, 1)

    if distance_type == 0:
        # nn.PairwiseDistance(p=2, eps=1e-6): ||x1 - x2 + eps||_2 over dim 1
        diff = m1 - m2 + 1e-6
        dist = jnp.sqrt(jnp.sum(diff * diff, axis=-1, keepdims=True))      # (TB, 1)
    elif distance_type == 1:
        # nn.CosineSimilarity(dim=1, eps=1e-8), via squared norms + one rsqrt
        dot = jnp.sum(m1 * m2, axis=-1, keepdims=True)
        n1sq = jnp.sum(m1 * m1, axis=-1, keepdims=True)
        n2sq = jnp.sum(m2 * m2, axis=-1, keepdims=True)
        dist = dot * jax.lax.rsqrt(jnp.maximum(n1sq * n2sq, 1e-16))        # (TB, 1)
    else:
        raise ValueError('The distance type should be 0 or 1')

    if loss_type == 0:
        sim = label * (dist * dist)
        clipped = jnp.maximum(margin - dist, 0.0)
        dissim = (1.0 - label) * (clipped * clipped)
    elif loss_type == 1:
        q = float(margin)
        alpha = 2.0 / q
        beta = 2.0 * q
        gamma = -2.77 / q
        sim = label * (alpha * (dist * dist))
        dissim = (1.0 - label) * (beta * jnp.exp(gamma * dist))
    else:
        raise ValueError('The loss type should be 0 or 1')

    if need_mask:
        # Only the tail tile (and any clamped-duplicate tiles) need masking;
        # interior tiles take the cheap unmasked path.
        tail = lin >= num_tiles - 1

        @pl.when(jnp.logical_not(tail))
        def _():
            acc_ref[0] += jnp.sum(sim)
            acc_ref[1] += jnp.sum(dissim)

        @pl.when(tail)
        def _():
            row = jax.lax.broadcasted_iota(jnp.int32, (block_b, 1), 0)
            valid = (lin * block_b + row) < batch_size
            # Select (not multiply) masking: padded rows may hold inf/NaN.
            acc_ref[0] += jnp.sum(jnp.where(valid, sim, 0.0))
            acc_ref[1] += jnp.sum(jnp.where(valid, dissim, 0.0))
    else:
        acc_ref[0] += jnp.sum(sim)
        acc_ref[1] += jnp.sum(dissim)

    @pl.when(t == tiles_per_core - 1)
    def _():
        # Emit this core's partial sums: [0, 0] = sim, [0, 1] = dissim.
        row = jax.lax.broadcasted_iota(jnp.int32, (_OUT_ROWS, 128), 0)
        lane = jax.lax.broadcasted_iota(jnp.int32, (_OUT_ROWS, 128), 1)
        blk = jnp.where((row == 0) & (lane == 0), acc_ref[0],
                        jnp.where((row == 0) & (lane == 1), acc_ref[1], 0.0))
        out_ref[...] = blk


def _auto_block_b(batch_size, d, itemsize, label_itemsize):
    """Byte-targeted batch tile: ~4 MiB per input block, working set <= ~40 MiB."""
    bytes_per_row = (4 * d * itemsize                     # 2 inputs x 2 pipeline buffers
                     + 2 * 128 * max(label_itemsize, 4)   # lane-padded (TB,1) label x 2
                     + 3 * d * 4)                         # f32 upcast / elementwise temps
    budget = 40 * 1024 * 1024
    tb_budget = budget // max(bytes_per_row, 1)
    tb_target = (4 * 1024 * 1024) // max(d * itemsize, 1)  # ~4 MiB per input block
    tb = max(32, min(int(tb_budget), int(tb_target)))
    tb = (tb // 32) * 32                                   # 32-row alignment (bf16/i8 safe)
    padded_b = ((batch_size + 31) // 32) * 32
    return max(32, min(tb, padded_b))


def siamese_loss(model1, model2, label, margin, loss_type=0, distance_type=0,
                 block_b=None):
    """Returns (loss, mean_similarity, mean_dissimilarity) as f32 scalars."""
    if distance_type not in (0, 1):
        raise ValueError('The distance type should be 0 or 1')
    if loss_type not in (0, 1):
        raise ValueError('The loss type should be 0 or 1')

    batch_size, d = model1.shape
    assert model1.shape == model2.shape
    if label.ndim == 1:
        label = label.reshape(batch_size, 1)
    assert label.shape == (batch_size, 1)

    in_itemsize = jnp.dtype(model1.dtype).itemsize
    lab_itemsize = jnp.dtype(label.dtype).itemsize

    if block_b is None:
        block_b = _auto_block_b(batch_size, d, in_itemsize, lab_itemsize)
    block_b = max(8, (int(block_b) // 8) * 8)

    num_tiles = pl.cdiv(batch_size, block_b)
    tiles_per_core = pl.cdiv(num_tiles, _NUM_CORES)
    need_mask = (batch_size % block_b != 0) or (_NUM_CORES * tiles_per_core != num_tiles)

    kernel = functools.partial(
        _siamese_kernel,
        loss_type=loss_type,
        distance_type=distance_type,
        margin=float(margin),
        batch_size=batch_size,
        block_b=block_b,
        num_tiles=num_tiles,
        tiles_per_core=tiles_per_core,
        need_mask=need_mask,
    )

    def in_map(c, t):
        # Clamp so an odd tile count never indexes a fully out-of-bounds block;
        # the duplicate's contribution is masked to zero in the kernel.
        return (jnp.minimum(c * tiles_per_core + t, num_tiles - 1), 0)

    cost = pl.CostEstimate(
        flops=int(6 * batch_size * d + 12 * batch_size),
        transcendentals=int(batch_size),
        bytes_accessed=int(2 * batch_size * d * in_itemsize
                           + batch_size * lab_itemsize
                           + _NUM_CORES * _OUT_ROWS * 128 * 4),
    )

    out = pl.pallas_call(
        kernel,
        out_shape=jax.ShapeDtypeStruct((_NUM_CORES * _OUT_ROWS, 128), jnp.float32),
        grid=(_NUM_CORES, tiles_per_core),
        in_specs=[
            pl.BlockSpec((block_b, d), in_map),          # model1 tile
            pl.BlockSpec((block_b, d), in_map),          # model2 tile
            pl.BlockSpec((block_b, 1), in_map),          # label tile
        ],
        out_specs=pl.BlockSpec((_OUT_ROWS, 128), lambda c, t: (c, 0)),
        scratch_shapes=[pltpu.SMEM((2,), jnp.float32)],  # per-core running sums
        compiler_params=pltpu.CompilerParams(
            dimension_semantics=("parallel", "arbitrary"),
            vmem_limit_bytes=48 * 1024 * 1024,
        ),
        cost_estimate=cost,
    )(model1, model2, label)

    parts = out.reshape(_NUM_CORES, _OUT_ROWS, 128)
    inv_b = 1.0 / float(batch_size)
    sim_mean = jnp.sum(parts[:, 0, 0]) * inv_b
    dissim_mean = jnp.sum(parts[:, 0, 1]) * inv_b
    loss = sim_mean + dissim_mean
    return loss, sim_mean, dissim_mean


def _reference(model1, model2, label, margin, loss_type=0, distance_type=0):
    """Pure-JAX reference mirroring the PyTorch forward."""
    model1 = model1.astype(jnp.float32)
    model2 = model2.astype(jnp.float32)
    label = label.astype(jnp.float32).reshape(-1, 1)
    if distance_type == 0:
        diff = model1 - model2 + 1e-6
        dist = jnp.sqrt(jnp.sum(diff * diff, axis=-1, keepdims=True))
    else:
        dot = jnp.sum(model1 * model2, axis=-1, keepdims=True)
        n1 = jnp.linalg.norm(model1, axis=-1, keepdims=True)
        n2 = jnp.linalg.norm(model2, axis=-1, keepdims=True)
        dist = dot / jnp.maximum(n1 * n2, 1e-8)
    if loss_type == 0:
        sim = label * dist ** 2
        dissim = (1 - label) * jnp.maximum(margin - dist, 0.0) ** 2
    else:
        q = margin
        sim = label * (2.0 / q) * dist ** 2
        dissim = (1 - label) * (2.0 * q) * jnp.exp((-2.77 / q) * dist)
    return jnp.mean(sim + dissim), jnp.mean(sim), jnp.mean(dissim)


if __name__ == "__main__":
    key = jax.random.PRNGKey(0)
    k1, k2, k3 = jax.random.split(key, 3)

    # B deliberately NOT a multiple of the tile size to exercise tail masking
    # and the clamped-duplicate tile on the second core.
    B, D = 20, 128
    model1 = jax.random.normal(k1, (B, D), dtype=jnp.float32)
    model2 = jax.random.normal(k2, (B, D), dtype=jnp.float32)
    label = jax.random.bernoulli(k3, 0.5, (B, 1)).astype(jnp.float32)
    margin = 1.0

    ok = True
    for loss_type in (0, 1):
        for distance_type in (0, 1):
            for tb in (8, None):   # multi-tile grid path and auto single-tile path
                got = siamese_loss(model1, model2, label, margin,
                                   loss_type=loss_type,
                                   distance_type=distance_type,
                                   block_b=tb)
                got = jax.block_until_ready(got)
                want = _reference(model1, model2, label, margin,
                                  loss_type=loss_type,
                                  distance_type=distance_type)
                for g, w in zip(got, want):
                    if not jnp.allclose(g, w, rtol=1e-5, atol=1e-5):
                        ok = False

    print("KERNEL_OK" if ok else "KERNEL_MISMATCH")
</pallas_src>

<mosaic_0001>
module attributes {stable_mosaic.version = 11 : i64} {
  func.func @_siamese_kernel(%arg0: i32, %arg1: i32, %arg2: memref<8x128xf32, #tpu.memory_space<vmem>>, %arg3: memref<8x128xf32, #tpu.memory_space<vmem>>, %arg4: memref<8x1xf32, #tpu.memory_space<vmem>>, %arg5: memref<8x128xf32, #tpu.memory_space<vmem>>, %arg6: memref<2xf32, #tpu.memory_space<smem>>) attributes {dimension_semantics = [#tpu.dimension_semantics<parallel>, #tpu.dimension_semantics<arbitrary>], iteration_bounds = array<i64: 2, 2>, scalar_prefetch = 0 : i64, scratch_operands = 1 : i64, tpu.core_type = #tpu.core_type<tc>, window_params = [{transform_indices = @transform_0, window_bounds = array<i64: 8, 128>}, {transform_indices = @transform_1, window_bounds = array<i64: 8, 128>}, {transform_indices = @transform_2, window_bounds = array<i64: 8, 1>}, {transform_indices = @transform_3, window_bounds = array<i64: 8, 128>}]} {
    %c2_i32 = arith.constant 2 : i32
    %0 = arith.muli %arg0, %c2_i32 : i32
    %1 = arith.addi %0, %arg1 : i32
    %c0_i32 = arith.constant 0 : i32
    %2 = arith.cmpi eq, %arg1, %c0_i32 : i32
    %3 = arith.extui %2 : i1 to i32
    %c0_i32_0 = arith.constant 0 : i32
    %4 = arith.cmpi ne, %3, %c0_i32_0 : i32
    scf.if %4 {
      %cst_14 = arith.constant 0.000000e+00 : f32
      %c0_15 = arith.constant 0 : index
      %34 = memref.load %arg6[%c0_15] : memref<2xf32, #tpu.memory_space<smem>>
      memref.store %cst_14, %arg6[%c0_15] : memref<2xf32, #tpu.memory_space<smem>>
      %cst_16 = arith.constant 0.000000e+00 : f32
      %c1 = arith.constant 1 : index
      %35 = memref.load %arg6[%c1] : memref<2xf32, #tpu.memory_space<smem>>
      memref.store %cst_16, %arg6[%c1] : memref<2xf32, #tpu.memory_space<smem>>
    } else {
    }
    %c0 = arith.constant 0 : index
    %c0_1 = arith.constant 0 : index
    %5 = vector.load %arg2[%c0, %c0_1] : memref<8x128xf32, #tpu.memory_space<vmem>>, vector<8x128xf32>
    %c0_2 = arith.constant 0 : index
    %c0_3 = arith.constant 0 : index
    %6 = vector.load %arg3[%c0_2, %c0_3] : memref<8x128xf32, #tpu.memory_space<vmem>>, vector<8x128xf32>
    %c0_4 = arith.constant 0 : index
    %c0_5 = arith.constant 0 : index
    %7 = vector.load %arg4[%c0_4, %c0_5] : memref<8x1xf32, #tpu.memory_space<vmem>>, vector<8x1xf32>
    %8 = arith.subf %5, %6 : vector<8x128xf32>
    %cst = arith.constant 9.99999997E-7 : f32
    %9 = vector.broadcast %cst : f32 to vector<8x128xf32>
    %10 = arith.addf %8, %9 : vector<8x128xf32>
    %11 = arith.mulf %10, %10 : vector<8x128xf32>
    %cst_6 = arith.constant dense<0.000000e+00> : vector<8xf32>
    %12 = vector.multi_reduction <add>, %11, %cst_6 [1] : vector<8x128xf32> to vector<8xf32>
    %13 = vector.shape_cast %12 : vector<8xf32> to vector<8x1xf32>
    %14 = math.sqrt %13 : vector<8x1xf32>
    %15 = arith.mulf %14, %14 : vector<8x1xf32>
    %16 = arith.mulf %7, %15 : vector<8x1xf32>
    %cst_7 = arith.constant 1.000000e+00 : f32
    %17 = vector.broadcast %cst_7 : f32 to vector<8x1xf32>
    %18 = arith.subf %17, %14 : vector<8x1xf32>
    %cst_8 = arith.constant 0.000000e+00 : f32
    %19 = vector.broadcast %cst_8 : f32 to vector<8x1xf32>
    %20 = arith.maximumf %18, %19 : vector<8x1xf32>
    %cst_9 = arith.constant 1.000000e+00 : f32
    %21 = vector.broadcast %cst_9 : f32 to vector<8x1xf32>
    %22 = arith.subf %21, %7 : vector<8x1xf32>
    %23 = arith.mulf %20, %20 : vector<8x1xf32>
    %24 = arith.mulf %22, %23 : vector<8x1xf32>
    %c2_i32_10 = arith.constant 2 : i32
    %25 = arith.cmpi sge, %1, %c2_i32_10 : i32
    %true = arith.constant true
    %26 = arith.xori %25, %true : i1
    %27 = arith.extui %26 : i1 to i32
    %c0_i32_11 = arith.constant 0 : i32
    %28 = arith.cmpi ne, %27, %c0_i32_11 : i32
    scf.if %28 {
      %c0_14 = arith.constant 0 : index
      %34 = memref.load %arg6[%c0_14] : memref<2xf32, #tpu.memory_space<smem>>
      %35 = vector.shape_cast %16 : vector<8x1xf32> to vector<1x8x1xf32>
      %cst_15 = arith.constant dense<0.000000e+00> : vector<1xf32>
      %36 = vector.multi_reduction <add>, %35, %cst_15 [1, 2] : vector<1x8x1xf32> to vector<1xf32>
      %37 = vector.shape_cast %36 : vector<1xf32> to vector<1x1x1xf32>
      %38 = vector.extract %37[0, 0, 0] : f32 from vector<1x1x1xf32>
      %39 = arith.addf %34, %38 : f32
      %c0_16 = arith.constant 0 : index
      %40 = memref.load %arg6[%c0_16] : memref<2xf32, #tpu.memory_space<smem>>
      memref.store %39, %arg6[%c0_16] : memref<2xf32, #tpu.memory_space<smem>>
      %c1 = arith.constant 1 : index
      %41 = memref.load %arg6[%c1] : memref<2xf32, #tpu.memory_space<smem>>
      %42 = vector.shape_cast %24 : vector<8x1xf32> to vector<1x8x1xf32>
      %cst_17 = arith.constant dense<0.000000e+00> : vector<1xf32>
      %43 = vector.multi_reduction <add>, %42, %cst_17 [1, 2] : vector<1x8x1xf32> to vector<1xf32>
      %44 = vector.shape_cast %43 : vector<1xf32> to vector<1x1x1xf32>
      %45 = vector.extract %44[0, 0, 0] : f32 from vector<1x1x1xf32>
      %46 = arith.addf %41, %45 : f32
      %c1_18 = arith.constant 1 : index
      %47 = memref.load %arg6[%c1_18] : memref<2xf32, #tpu.memory_space<smem>>
      memref.store %46, %arg6[%c1_18] : memref<2xf32, #tpu.memory_space<smem>>
    } else {
    }
    %29 = arith.extui %25 : i1 to i32
    %c0_i32_12 = arith.constant 0 : i32
    %30 = arith.cmpi ne, %29, %c0_i32_12 : i32
    scf.if %30 {
      %34 = tpu.iota {dimensions = array<i32: 0>} : vector<8x1xi32>
      %c8_i32 = arith.constant 8 : i32
      %35 = arith.muli %1, %c8_i32 : i32
      %36 = vector.broadcast %35 : i32 to vector<8x1xi32>
      %37 = arith.addi %36, %34 : vector<8x1xi32>
      %c20_i32 = arith.constant 20 : i32
      %38 = vector.broadcast %c20_i32 : i32 to vector<8x1xi32>
      %39 = arith.cmpi slt, %37, %38 : vector<8x1xi32>
      %c0_14 = arith.constant 0 : index
      %40 = memref.load %arg6[%c0_14] : memref<2xf32, #tpu.memory_space<smem>>
      %cst_15 = arith.constant 0.000000e+00 : f32
      %41 = vector.broadcast %cst_15 : f32 to vector<8x1xf32>
      %42 = arith.select %39, %16, %41 : vector<8x1xi1>, vector<8x1xf32>
      %43 = vector.shape_cast %42 : vector<8x1xf32> to vector<1x8x1xf32>
      %cst_16 = arith.constant dense<0.000000e+00> : vector<1xf32>
      %44 = vector.multi_reduction <add>, %43, %cst_16 [1, 2] : vector<1x8x1xf32> to vector<1xf32>
      %45 = vector.shape_cast %44 : vector<1xf32> to vector<1x1x1xf32>
      %46 = vector.extract %45[0, 0, 0] : f32 from vector<1x1x1xf32>
      %47 = arith.addf %40, %46 : f32
      %c0_17 = arith.constant 0 : index
      %48 = memref.load %arg6[%c0_17] : memref<2xf32, #tpu.memory_space<smem>>
      memref.store %47, %arg6[%c0_17] : memref<2xf32, #tpu.memory_space<smem>>
      %c1 = arith.constant 1 : index
      %49 = memref.load %arg6[%c1] : memref<2xf32, #tpu.memory_space<smem>>
      %cst_18 = arith.constant 0.000000e+00 : f32
      %50 = vector.broadcast %cst_18 : f32 to vector<8x1xf32>
      %51 = arith.select %39, %24, %50 : vector<8x1xi1>, vector<8x1xf32>
      %52 = vector.shape_cast %51 : vector<8x1xf32> to vector<1x8x1xf32>
      %cst_19 = arith.constant dense<0.000000e+00> : vector<1xf32>
      %53 = vector.multi_reduction <add>, %52, %cst_19 [1, 2] : vector<1x8x1xf32> to vector<1xf32>
      %54 = vector.shape_cast %53 : vector<1xf32> to vector<1x1x1xf32>
      %55 = vector.extract %54[0, 0, 0] : f32 from vector<1x1x1xf32>
      %56 = arith.addf %49, %55 : f32
      %c1_20 = arith.constant 1 : index
      %57 = memref.load %arg6[%c1_20] : memref<2xf32, #tpu.memory_space<smem>>
      memref.store %56, %arg6[%c1_20] : memref<2xf32, #tpu.memory_space<smem>>
    } else {
    }
    %c1_i32 = arith.constant 1 : i32
    %31 = arith.cmpi eq, %arg1, %c1_i32 : i32
    %32 = arith.extui %31 : i1 to i32
    %c0_i32_13 = arith.constant 0 : i32
    %33 = arith.cmpi ne, %32, %c0_i32_13 : i32
    scf.if %33 {
      %34 = tpu.iota {dimensions = array<i32: 0>} : vector<8x128xi32>
      %35 = tpu.iota {dimensions = array<i32: 1>} : vector<8x128xi32>
      %c0_i32_14 = arith.constant 0 : i32
      %36 = vector.broadcast %c0_i32_14 : i32 to vector<8x128xi32>
      %37 = arith.cmpi eq, %34, %36 : vector<8x128xi32>
      %c0_i32_15 = arith.constant 0 : i32
      %38 = vector.broadcast %c0_i32_15 : i32 to vector<8x128xi32>
      %39 = arith.cmpi eq, %35, %38 : vector<8x128xi32>
      %40 = arith.andi %37, %39 : vector<8x128xi1>
      %c0_16 = arith.constant 0 : index
      %41 = memref.load %arg6[%c0_16] : memref<2xf32, #tpu.memory_space<smem>>
      %c0_i32_17 = arith.constant 0 : i32
      %42 = vector.broadcast %c0_i32_17 : i32 to vector<8x128xi32>
      %43 = arith.cmpi eq, %34, %42 : vector<8x128xi32>
      %c1_i32_18 = arith.constant 1 : i32
      %44 = vector.broadcast %c1_i32_18 : i32 to vector<8x128xi32>
      %45 = arith.cmpi eq, %35, %44 : vector<8x128xi32>
      %46 = arith.andi %43, %45 : vector<8x128xi1>
      %c1 = arith.constant 1 : index
      %47 = memref.load %arg6[%c1] : memref<2xf32, #tpu.memory_space<smem>>
      %cst_19 = arith.constant 0.000000e+00 : f32
      %48 = vector.broadcast %47 : f32 to vector<8x128xf32>
      %49 = vector.broadcast %cst_19 : f32 to vector<8x128xf32>
      %50 = arith.select %46, %48, %49 : vector<8x128xi1>, vector<8x128xf32>
      %51 = vector.broadcast %41 : f32 to vector<8x128xf32>
      %52 = arith.select %40, %51, %50 : vector<8x128xi1>, vector<8x128xf32>
      %c0_20 = arith.constant 0 : index
      %c0_21 = arith.constant 0 : index
      %53 = vector.load %arg5[%c0_20, %c0_21] : memref<8x128xf32, #tpu.memory_space<vmem>>, vector<8x128xf32>
      tpu.vector_store %arg5[%c0_20, %c0_21], %52 {strides = array<i32>} : memref<8x128xf32, #tpu.memory_space<vmem>>, vector<8x128xf32>,
    } else {
    }
    return
  }
  func.func @transform_0(%arg0: i32, %arg1: i32) -> (i32, i32) {
    %c2_i32 = arith.constant 2 : i32
    %0 = arith.muli %arg0, %c2_i32 : i32
    %1 = arith.addi %0, %arg1 : i32
    %c2_i32_0 = arith.constant 2 : i32
    %2 = arith.minsi %1, %c2_i32_0 : i32
    %c0_i32 = arith.constant 0 : i32
    %c0_i32_1 = arith.constant 0 : i32
    return %2, %c0_i32 : i32, i32
  }
  func.func @transform_1(%arg0: i32, %arg1: i32) -> (i32, i32) {
    %c2_i32 = arith.constant 2 : i32
    %0 = arith.muli %arg0, %c2_i32 : i32
    %1 = arith.addi %0, %arg1 : i32
    %c2_i32_0 = arith.constant 2 : i32
    %2 = arith.minsi %1, %c2_i32_0 : i32
    %c0_i32 = arith.constant 0 : i32
    %c0_i32_1 = arith.constant 0 : i32
    return %2, %c0_i32 : i32, i32
  }
  func.func @transform_2(%arg0: i32, %arg1: i32) -> (i32, i32) {
    %c2_i32 = arith.constant 2 : i32
    %0 = arith.muli %arg0, %c2_i32 : i32
    %1 = arith.addi %0, %arg1 : i32
    %c2_i32_0 = arith.constant 2 : i32
    %2 = arith.minsi %1, %c2_i32_0 : i32
    %c0_i32 = arith.constant 0 : i32
    %c0_i32_1 = arith.constant 0 : i32
    return %2, %c0_i32 : i32, i32
  }
  func.func @transform_3(%arg0: i32, %arg1: i32) -> (i32, i32) {
    %c0_i32 = arith.constant 0 : i32
    %c0_i32_0 = arith.constant 0 : i32
    return %arg0, %c0_i32 : i32, i32
  }
}

</mosaic_0001>

<llo_original>
// kernel: tpu_custom_call.1
$region0: #{tpu_custom_call.1}
  #allocation0 [shape = 'u32[]', space=smem, size = 0x4, offset = 0x4, fixed_abs, tag = 'smem constant byte address 0x4 - core index']
  #allocation1 [shape = 'u32[144,128]{1,0:T(1,128)}', space=vmem, size = 0x12000, scoped, tag = 'internal scratch']
  #allocation2 [shape = 'f32[2]{0:T(128)}', space=smem, size = 0x200, scoped, tag = 'scratch operand']
  %s0 = inlined_call_operand.vmem [shape: f32[20,128], index: 0, kind: input, shape index: {}]
  %s1 = inlined_call_operand.hbm [shape: f32[20,128], index: 1, kind: input, shape index: {}]
  %s2 = inlined_call_operand.vmem [shape: f32[20,1], index: 2, kind: input, shape index: {}]
  %s3 = inlined_call_operand.hbm [shape: f32[16,128], index: 3, kind: output, shape index: {}]
  %s4 = sld [smem:[#allocation0]]
  $region65: #{tpu_custom_call.1} parent=0
    _
  %s6 = ssub.s32 1, %s4
  %s7 = scalar_select 0, %s6, %s4
  $region1: #{tpu_custom_call.1} parent=0
    #allocation3 [shape = 'u8[8192]{0}', space=vmem, size = 0x2000, scoped, tag = 'input window, operand 1']
    #allocation4 [shape = 's32[2]{0}', space=sflag, size = 0x8, scoped, tag = 'scoped memory for tpu_custom_call.1']
    #allocation5 [shape = 's32[2]{0}', space=sflag, size = 0x8, scoped, tag = 'scoped memory for tpu_custom_call.1']
    #allocation6 [shape = 'u8[8192]{0}', space=vmem, size = 0x2000, scoped, tag = 'output window, operand 0']
    %8 = vsyncpa [#allocation4], 0
    %s9 = scalar_lea.sflag [#allocation4], 1
    %10 = vsyncpa %s9, 0
    %11 = vsyncpa [#allocation5], 0
    %s12 = scalar_lea.sflag [#allocation5], 1
    %13 = vsyncpa %s12, 0
    loop: start=0, step=1, limit=6
    $region2: #{tpu_custom_call.1} parent=1 // loop_pre_header
      _
    $region3: #{tpu_custom_call.1} parent=1 // loop_header
      %s15 = sphi 0, %s19
      %p16 = scmp.ge.s32.totalorder %s15, 6
      %s22 = sphi 0, %s34
      %s23 = sphi 0, %s30
      %s24 = sphi 0, %s22
      %s25 = sphi 0, %s23
      %s26 = sphi 0, %s24
      %s27 = sphi 0, %s25
      %s45 = sphi 0, %s47
      %s48 = sphi 0, %s45
      %s49 = sphi 0, %s48
      %s65 = sphi 0, %s49
      %s79 = sphi 0, %s81
      %s82 = sphi 0, %s79
      %s83 = sphi 0, %s82
      %s99 = sphi 0, %s83
      %s113 = sphi 0, %s115
      %s116 = sphi 0, %s113
      %s117 = sphi 0, %s116
      %s133 = sphi 0, %s117
      %s139 = sphi 0, %s141
      %s142 = sphi 0, %s139
      %s143 = sphi 0, %s142
      %s159 = sphi 0, %s143
    $region4: #{tpu_custom_call.1} parent=1 // loop_header_branch
      %18 = sbr.rel (%p16) target = $region8
    $region5: #{tpu_custom_call.1} parent=1 // loop_body
      %s20 = ssub.s32 %s15, 1
      %s21 = ssub.s32 %s15, 2
      %s28 = sadd.s32 1, %s23
      %p29 = scmp.ge.s32.totalorder %s28, 2
      %s30 = scalar_select %p29, 0, %s28
      %s31 = sadd.s32 1, %s22
      %s32 = scalar_select %p29, %s31, %s22
      %p33 = scmp.ge.s32.totalorder %s32, 2
      %s34 = scalar_select %p33, 0, %s32
      %s35 = smul.u32 %s22, 2
      %s36 = sadd.s32 %s35, %s23
      %p37 = scmp.lt.s32.totalorder %s36, 2
      %s38 = scalar_select %p37, %s36, 2
      %s39 = smul.u32 %s34, 2
      %s40 = sadd.s32 %s39, %s30
      %p41 = scmp.lt.s32.totalorder %s40, 2
      %s42 = scalar_select %p41, %s40, 2
      %s43 = ssub.s32 %s38, %s42
      %p44 = scmp.eq.s32.totalorder %s43, 0
      %s46 = sadd.s32 %s45, 1
      %s47 = scalar_select %p44, %s45, %s46
      %p50 = pneg %p44
      %p51 = scmp.eq.s32.totalorder %s15, 3
      %p52 = por %p50, %p51
      %p53 = scmp.ne.s32.totalorder %s45, %s48
      %p54 = scmp.eq.s32.totalorder %s15, 0
      %p55 = por %p53, %p54
      %p56 = scmp.ne.s32.totalorder %s45, %s48
      %p57 = scmp.eq.s32.totalorder %s20, 3
      %p58 = por %p56, %p57
      %p59 = scmp.ne.s32.totalorder %s48, %s49
      %p60 = scmp.eq.s32.totalorder %s20, 0
      %p61 = por %p59, %p60
      %p62 = scmp.ne.s32.totalorder %s48, %s49
      %p63 = scmp.eq.s32.totalorder %s21, 3
      %p64 = por %p62, %p63
      %p66 = scmp.ne.s32.totalorder %s49, %s65
      %p67 = scmp.eq.s32.totalorder %s21, 0
      %p68 = por %p66, %p67
      %s69 = smul.u32 %s22, 2
      %s70 = sadd.s32 %s69, %s23
      %p71 = scmp.lt.s32.totalorder %s70, 2
      %s72 = scalar_select %p71, %s70, 2
      %s73 = smul.u32 %s34, 2
      %s74 = sadd.s32 %s73, %s30
      %p75 = scmp.lt.s32.totalorder %s74, 2
      %s76 = scalar_select %p75, %s74, 2
      %s77 = ssub.s32 %s72, %s76
      %p78 = scmp.eq.s32.totalorder %s77, 0
      %s80 = sadd.s32 %s79, 1
      %s81 = scalar_select %p78, %s79, %s80
      %p84 = pneg %p78
      %p85 = scmp.eq.s32.totalorder %s15, 3
      %p86 = por %p84, %p85
      %p87 = scmp.ne.s32.totalorder %s79, %s82
      %p88 = scmp.eq.s32.totalorder %s15, 0
      %p89 = por %p87, %p88
      %p90 = scmp.ne.s32.totalorder %s79, %s82
      %p91 = scmp.eq.s32.totalorder %s20, 3
      %p92 = por %p90, %p91
      %p93 = scmp.ne.s32.totalorder %s82, %s83
      %p94 = scmp.eq.s32.totalorder %s20, 0
      %p95 = por %p93, %p94
      %p96 = scmp.ne.s32.totalorder %s82, %s83
      %p97 = scmp.eq.s32.totalorder %s21, 3
      %p98 = por %p96, %p97
      %p100 = scmp.ne.s32.totalorder %s83, %s99
      %p101 = scmp.eq.s32.totalorder %s21, 0
      %p102 = por %p100, %p101
      %s103 = smul.u32 %s22, 2
      %s104 = sadd.s32 %s103, %s23
      %p105 = scmp.lt.s32.totalorder %s104, 2
      %s106 = scalar_select %p105, %s104, 2
      %s107 = smul.u32 %s34, 2
      %s108 = sadd.s32 %s107, %s30
      %p109 = scmp.lt.s32.totalorder %s108, 2
      %s110 = scalar_select %p109, %s108, 2
      %s111 = ssub.s32 %s106, %s110
      %p112 = scmp.eq.s32.totalorder %s111, 0
      %s114 = sadd.s32 %s113, 1
      %s115 = scalar_select %p112, %s113, %s114
      %p118 = pneg %p112
      %p119 = scmp.eq.s32.totalorder %s15, 3
      %p120 = por %p118, %p119
      %p121 = scmp.ne.s32.totalorder %s113, %s116
      %p122 = scmp.eq.s32.totalorder %s15, 0
      %p123 = por %p121, %p122
      %p124 = scmp.ne.s32.totalorder %s113, %s116
      %p125 = scmp.eq.s32.totalorder %s20, 3
      %p126 = por %p124, %p125
      %p127 = scmp.ne.s32.totalorder %s116, %s117
      %p128 = scmp.eq.s32.totalorder %s20, 0
      %p129 = por %p127, %p128
      %p130 = scmp.ne.s32.totalorder %s116, %s117
      %p131 = scmp.eq.s32.totalorder %s21, 3
      %p132 = por %p130, %p131
      %p134 = scmp.ne.s32.totalorder %s117, %s133
      %p135 = scmp.eq.s32.totalorder %s21, 0
      %p136 = por %p134, %p135
      %s137 = ssub.s32 %s22, %s34
      %p138 = scmp.eq.s32.totalorder %s137, 0
      %s140 = sadd.s32 %s139, 1
      %s141 = scalar_select %p138, %s139, %s140
      %p144 = pneg %p138
      %p145 = scmp.eq.s32.totalorder %s15, 3
      %p146 = por %p144, %p145
      %p147 = scmp.ne.s32.totalorder %s139, %s142
      %p148 = scmp.eq.s32.totalorder %s15, 0
      %p149 = por %p147, %p148
      %p150 = scmp.ne.s32.totalorder %s139, %s142
      %p151 = scmp.eq.s32.totalorder %s20, 3
      %p152 = por %p150, %p151
      %p153 = scmp.ne.s32.totalorder %s142, %s143
      %p154 = scmp.eq.s32.totalorder %s20, 0
      %p155 = por %p153, %p154
      %p156 = scmp.ne.s32.totalorder %s142, %s143
      %p157 = scmp.eq.s32.totalorder %s21, 3
      %p158 = por %p156, %p157
      %p160 = scmp.ne.s32.totalorder %s143, %s159
      %p161 = scmp.eq.s32.totalorder %s21, 0
      %p162 = por %p160, %p161
      %p163 = scmp.le.s32.totalorder 1, %s15
      %p164 = scmp.lt.s32.totalorder %s15, 5
      %p165 = pnand %p163, %p164
      %p166 = pneg %p165
      // Predicated region
      $region9: #{tpu_custom_call.1} parent=5 // pred_check
        _
      $region10: #{tpu_custom_call.1} parent=5 // pred_check_branch
        %168 = sbr.rel (%p165) target = $region12
      $region11: #{tpu_custom_call.1} parent=5 // pred_region
        %s169 = ssub.s32 %s15, 1
      $region12: #{tpu_custom_call.1} parent=5 // pred_fallthru
        _
      %p170 = scmp.lt.s32.totalorder %s15, 4
      // Predicated region
      $region13: #{tpu_custom_call.1} parent=5 // pred_check
        %p171 = pneg %p170
      $region14: #{tpu_custom_call.1} parent=5 // pred_check_branch
        %173 = sbr.rel (%p171) target = $region16
      $region15: #{tpu_custom_call.1} parent=5 // pred_region
        // Predicated region
        $region17: #{tpu_custom_call.1} parent=15 // pred_check
          %p174 = pneg %p55
        $region18: #{tpu_custom_call.1} parent=15 // pred_check_branch
          %176 = sbr.rel (%p174) target = $region20
        $region19: #{tpu_custom_call.1} parent=15 // pred_region
          %s177 = smul.u32 %s22, 2
          %s178 = sadd.s32 %s177, %s23
          %p179 = scmp.lt.s32.totalorder %s178, 2
          %s180 = scalar_select %p179, %s178, 2
          %p181 = scmp.lt.s32.totalorder %s180, 2
          %s182 = scalar_select %p181, %s180, 2
          %s183 = smul.addr %s182, 8
          %s184 = scalar_lea.vmem %s0, %s183
          %s185 = smul.u32 %s22, 2
          %s186 = sadd.s32 %s185, %s23
          %p187 = scmp.lt.s32.totalorder %s186, 2
          %s188 = scalar_select %p187, %s186, 2
        $region20: #{tpu_custom_call.1} parent=15 // pred_fallthru
          _
        // Predicated region
        $region21: #{tpu_custom_call.1} parent=15 // pred_check
          %p189 = pneg %p89
        $region22: #{tpu_custom_call.1} parent=15 // pred_check_branch
          %191 = sbr.rel (%p189) target = $region24
        $region23: #{tpu_custom_call.1} parent=15 // pred_region
          %s192 = sand.u32 %s79, 1
          %s193 = scalar_lea.sflag [#allocation4], %s192
          %s194 = sand.u32 %s79, 1
          %s195 = smul.addr %s194, 8
          %s196 = scalar_lea.vmem [#allocation3], %s195
          %s197 = smul.u32 %s22, 2
          %s198 = sadd.s32 %s197, %s23
          %p199 = scmp.lt.s32.totalorder %s198, 2
          %s200 = scalar_select %p199, %s198, 2
          %s202 = ssub.s32 128, 128
          %203 = vsyncadd %s193, %s202
          %s204 = smul.addr %s200, 128
          %s205 = scalar_lea.hbm %s1, %s204
          %s207 = sshll.u32 %s196, 4
          %s208 = int_to_ptr.vmem [resolvable:$true] %s207
          %210 = dma.hbm_to_vmem [thread:$0]  %s205, 128, %s208, %s193
        $region24: #{tpu_custom_call.1} parent=15 // pred_fallthru
          _
        // Predicated region
        $region25: #{tpu_custom_call.1} parent=15 // pred_check
          %p211 = pneg %p123
        $region26: #{tpu_custom_call.1} parent=15 // pred_check_branch
          %213 = sbr.rel (%p211) target = $region28
        $region27: #{tpu_custom_call.1} parent=15 // pred_region
          %s214 = smul.u32 %s22, 2
          %s215 = sadd.s32 %s214, %s23
          %p216 = scmp.lt.s32.totalorder %s215, 2
          %s217 = scalar_select %p216, %s215, 2
          %p218 = scmp.lt.s32.totalorder %s217, 2
          %s219 = scalar_select %p218, %s217, 2
          %s220 = smul.addr %s219, 8
          %s221 = scalar_lea.vmem %s2, %s220
          %s222 = smul.u32 %s22, 2
          %s223 = sadd.s32 %s222, %s23
          %p224 = scmp.lt.s32.totalorder %s223, 2
          %s225 = scalar_select %p224, %s223, 2
        $region28: #{tpu_custom_call.1} parent=15 // pred_fallthru
          _
      $region16: #{tpu_custom_call.1} parent=5 // pred_fallthru
        _
      %p226 = scmp.le.s32.totalorder 1, %s15
      %p227 = scmp.lt.s32.totalorder %s15, 5
      %p228 = pnand %p226, %p227
      %p229 = pneg %p228
      // Predicated region
      $region29: #{tpu_custom_call.1} parent=5 // pred_check
        _
      $region30: #{tpu_custom_call.1} parent=5 // pred_check_branch
        %231 = sbr.rel (%p228) target = $region32
      $region31: #{tpu_custom_call.1} parent=5 // pred_region
        %s232 = ssub.s32 %s15, 1
        %s233 = sand.u32 %s82, 1
        %s234 = scalar_lea.sflag [#allocation4], %s233
        %s235 = sand.u32 %s82, 1
        %s236 = smul.addr %s235, 8
        %s237 = scalar_lea.vmem [#allocation3], %s236
        // Predicated region
        $region33: #{tpu_custom_call.1} parent=31 // pred_check
          %p238 = pneg %p95
        $region34: #{tpu_custom_call.1} parent=31 // pred_check_branch
          %240 = sbr.rel (%p238) target = $region36
        $region35: #{tpu_custom_call.1} parent=31 // pred_region
          %241 = dma.done %s234, 128
        $region36: #{tpu_custom_call.1} parent=31 // pred_fallthru
          _
        %s242 = smul.u32 %s24, 2
        %s243 = sadd.s32 %s242, %s25
        %p244 = scmp.lt.s32.totalorder %s243, 2
        %s245 = scalar_select %p244, %s243, 2
        %p246 = scmp.lt.s32.totalorder %s245, 2
        %s247 = scalar_select %p246, %s245, 2
        %s248 = smul.addr %s247, 8
        %s249 = scalar_lea.vmem %s0, %s248
        %p250 = pneg %p61
        %p251 = pneg %p58
        %s252 = sand.u32 %s82, 1
        %s253 = scalar_lea.sflag [#allocation4], %s252
        %s254 = sand.u32 %s82, 1
        %s255 = smul.addr %s254, 8
        %s256 = scalar_lea.vmem [#allocation3], %s255
        %p257 = pneg %p95
        %p258 = pneg %p92
        %s259 = smul.u32 %s24, 2
        %s260 = sadd.s32 %s259, %s25
        %p261 = scmp.lt.s32.totalorder %s260, 2
        %s262 = scalar_select %p261, %s260, 2
        %p263 = scmp.lt.s32.totalorder %s262, 2
        %s264 = scalar_select %p263, %s262, 2
        %s265 = smul.addr %s264, 8
        %s266 = scalar_lea.vmem %s2, %s265
        %p267 = pneg %p129
        %p268 = pneg %p126
        %p269 = pneg %p155
        %p270 = pneg %p152
        %s271 = sand.u32 %s142, 1
        %s272 = scalar_lea.sflag [#allocation5], %s271
        %s273 = sand.u32 %s142, 1
        %s274 = smul.addr %s273, 8
        %s275 = scalar_lea.vmem [#allocation6], %s274
        %s276 = smul.u32 %s24, 2
        %s277 = sadd.s32 %s276, %s25
        %p278 = scmp.lt.s32.totalorder %s277, 2
        %s279 = scalar_select %p278, %s277, 2
        %p280 = scmp.lt.s32.totalorder %s279, 2
        %s281 = scalar_select %p280, %s279, 2
        %s282 = smul.addr %s281, 8
        %s283 = scalar_lea.vmem %s0, %s282
        %s284 = smul.u32 %s24, 2
        %s285 = sadd.s32 %s284, %s25
        %p286 = scmp.lt.s32.totalorder %s285, 2
        %s287 = scalar_select %p286, %s285, 2
        %s288 = smul.u32 %s24, 2
        %s289 = sadd.s32 %s288, %s25
        %p290 = scmp.lt.s32.totalorder %s289, 2
        %s291 = scalar_select %p290, %s289, 2
        %s292 = smul.u32 %s24, 2
        %s293 = sadd.s32 %s292, %s25
        %p294 = scmp.lt.s32.totalorder %s293, 2
        %s295 = scalar_select %p294, %s293, 2
        %p296 = scmp.lt.s32.totalorder %s295, 2
        %s297 = scalar_select %p296, %s295, 2
        %s298 = smul.addr %s297, 8
        %s299 = scalar_lea.vmem %s2, %s298
        %s300 = smul.u32 %s24, 2
        %s301 = sadd.s32 %s300, %s25
        %p302 = scmp.lt.s32.totalorder %s301, 2
        %s303 = scalar_select %p302, %s301, 2
        %s304 = smul.u32 %s24, 2
        %s305 = sadd.s32 %s304, %s25
        %p306 = scmp.eq.s32.totalorder %s25, 0
        // Predicated region
        $region37: #{tpu_custom_call.1} parent=31 // pred_check
          %p307 = pneg %p306
        $region38: #{tpu_custom_call.1} parent=31 // pred_check_branch
          %309 = sbr.rel (%p307) target = $region40
        $region39: #{tpu_custom_call.1} parent=31 // pred_region
          %s310 = scalar_lea.smem [#allocation2], 0
          %311 = sst [smem:[%s310]] 0.0
          %s312 = scalar_lea.smem [#allocation2], 1
          %313 = sst [smem:[%s312]] 0.0
        $region40: #{tpu_custom_call.1} parent=31 // pred_fallthru
          _
        %v314 = vld [vmem:[%s283] sm:$0xff]
        %v315 = vld [vmem:[%s237] sm:$0xff]
        %v316 = vld [vmem:[%s299] sm:$0xff]
        %v317 = vsub.f32 %v314, %v315
        %v318 = vadd.f32 %v317, 1e-06
        %v319 = vmul.f32 %v318, %v318
        %320 = vadd.xlane.f32.xlu0 %v319
        %v321 = vpop.xlane.xlu0 %320
        %v322 = vrsqrt.pop %v321
        %v323 = vmul.f32 %v321, %v322
        %vm324 = vcmp.eq.f32.partialorder %v321, inf
        %v325 = vsel %vm324, %v321, %v323
        %vm326 = vcmp.eq.f32.partialorder %v321, 0.0
        %v327 = vand.u32 %v321, 2147483648
        %v328 = vsel %vm326, %v327, %v325
        %v329 = vmul.f32 %v328, %v328
        %v330 = vmul.f32 %v316, %v329
        %v331 = vsub.f32 1.0, %v328
        %v332 = vmax.f32 %v331, 0.0
        %v333 = vsub.f32 1.0, %v316
        %v334 = vmul.f32 %v332, %v332
        %v335 = vmul.f32 %v333, %v334
        %p336 = scmp.ge.s32.totalorder %s305, 2
        %p337 = scmp.lt.s32.totalorder %s305, 2
        // Predicated region
        $region41: #{tpu_custom_call.1} parent=31 // pred_check
          %p338 = pneg %p337
        $region42: #{tpu_custom_call.1} parent=31 // pred_check_branch
          %340 = sbr.rel (%p338) target = $region44
        $region43: #{tpu_custom_call.1} parent=31 // pred_region
          %s341 = sld [smem:[#allocation2]]
          %vm342 = vcmask 7168
          %v343 = vsel %vm342, %v330, 0.0
          %344 = vadd.xlane.f32.xlu0 %v343
          %v345 = vpop.xlane.xlu0 %344
          %v346 = vrot.slane %v345, 4
          %v347 = vadd.f32 %v345, %v346
          %v348 = vrot.slane %v347, 2
          %v349 = vadd.f32 %v347, %v348
          %v350 = vrot.slane %v349, 1
          %v351 = vadd.f32 %v349, %v350
          %s352 = vtos %v351
          %s353 = sadd.f32 %s341, %s352
          %s354 = scalar_lea.smem [#allocation2], 0
          %355 = sst [smem:[%s354]] %s353
          %s356 = sld [smem:[#allocation2 + $0x1]]
          %v357 = vsel %vm342, %v335, 0.0
          %358 = vadd.xlane.f32.xlu0 %v357
          %v359 = vpop.xlane.xlu0 %358
          %v360 = vrot.slane %v359, 4
          %v361 = vadd.f32 %v359, %v360
          %v362 = vrot.slane %v361, 2
          %v363 = vadd.f32 %v361, %v362
          %v364 = vrot.slane %v363, 1
          %v365 = vadd.f32 %v363, %v364
          %s366 = vtos %v365
          %s367 = sadd.f32 %s356, %s366
          %s368 = scalar_lea.smem [#allocation2], 1
          %369 = sst [smem:[%s368]] %s367
        $region44: #{tpu_custom_call.1} parent=31 // pred_fallthru
          _
        // Predicated region
        $region45: #{tpu_custom_call.1} parent=31 // pred_check
          %p370 = pneg %p336
        $region46: #{tpu_custom_call.1} parent=31 // pred_check_branch
          %372 = sbr.rel (%p370) target = $region48
        $region47: #{tpu_custom_call.1} parent=31 // pred_region
          %v373 = vlaneseq
          %v374 = vshrl.u32 %v373, 7
          %s375 = smul.u32 %s305, 8
          %v376 = vstv %s375
          %v377 = vadd.s32 %v376, %v374
          %vm378 = vcmp.lt.s32.totalorder %v377, 20
          %s379 = sld [smem:[#allocation2]]
          %v380 = vsel %vm378, %v330, 0.0
          %vm381 = vcmask 7168
          %v382 = vsel %vm381, %v380, 0.0
          %383 = vadd.xlane.f32.xlu0 %v382
          %v384 = vpop.xlane.xlu0 %383
          %v385 = vrot.slane %v384, 4
          %v386 = vadd.f32 %v384, %v385
          %v387 = vrot.slane %v386, 2
          %v388 = vadd.f32 %v386, %v387
          %v389 = vrot.slane %v388, 1
          %v390 = vadd.f32 %v388, %v389
          %s391 = vtos %v390
          %s392 = sadd.f32 %s379, %s391
          %s393 = scalar_lea.smem [#allocation2], 0
          %394 = sst [smem:[%s393]] %s392
          %s395 = sld [smem:[#allocation2 + $0x1]]
          %v396 = vsel %vm378, %v335, 0.0
          %v397 = vsel %vm381, %v396, 0.0
          %398 = vadd.xlane.f32.xlu0 %v397
          %v399 = vpop.xlane.xlu0 %398
          %v400 = vrot.slane %v399, 4
          %v401 = vadd.f32 %v399, %v400
          %v402 = vrot.slane %v401, 2
          %v403 = vadd.f32 %v401, %v402
          %v404 = vrot.slane %v403, 1
          %v405 = vadd.f32 %v403, %v404
          %s406 = vtos %v405
          %s407 = sadd.f32 %s395, %s406
          %s408 = scalar_lea.smem [#allocation2], 1
          %409 = sst [smem:[%s408]] %s407
        $region48: #{tpu_custom_call.1} parent=31 // pred_fallthru
          _
        %p410 = scmp.eq.s32.totalorder %s25, 1
        // Predicated region
        $region49: #{tpu_custom_call.1} parent=31 // pred_check
          %p411 = pneg %p410
        $region50: #{tpu_custom_call.1} parent=31 // pred_check_branch
          %413 = sbr.rel (%p411) target = $region52
        $region51: #{tpu_custom_call.1} parent=31 // pred_region
          %v414 = vlaneseq
          %v415 = vshrl.u32 %v414, 7
          %v416 = vlaneseq
          %v417 = vand.u32 %v416, 127
          %vm418 = vcmp.eq.s32.totalorder %v415, 0
          %vm419 = vcmp.eq.s32.totalorder %v417, 0
          %vm420 = vmand %vm418, %vm419
          %s421 = sld [smem:[#allocation2]]
          %vm422 = vcmp.eq.s32.totalorder %v417, 1
          %vm423 = vmand %vm418, %vm422
          %s424 = sld [smem:[#allocation2 + $0x1]]
          %v425 = vstv %s424
          %v426 = vsel %vm423, %v425, 0.0
          %v427 = vstv %s421
          %v428 = vsel %vm420, %v427, %v426
          %429 = vst [vmem:[%s275] sm:$0xff] %v428
        $region52: #{tpu_custom_call.1} parent=31 // pred_fallthru
          _
        %s430 = sand.u32 %s142, 1
        %s431 = scalar_lea.sflag [#allocation5], %s430
        %s432 = sand.u32 %s142, 1
        %s433 = smul.addr %s432, 8
        %s434 = scalar_lea.vmem [#allocation6], %s433
        // Predicated region
        $region53: #{tpu_custom_call.1} parent=31 // pred_check
          %p435 = pneg %p152
        $region54: #{tpu_custom_call.1} parent=31 // pred_check_branch
          %437 = sbr.rel (%p435) target = $region56
        $region55: #{tpu_custom_call.1} parent=31 // pred_region
          %s439 = ssub.s32 128, 128
          %440 = vsyncadd %s431, %s439
          %s441 = smul.addr %s24, 128
          %s442 = scalar_lea.hbm %s3, %s441
          %s444 = sshll.u32 %s434, 4
          %s445 = int_to_ptr.vmem [resolvable:$true] %s444
          %447 = dma.vmem_to_hbm [thread:$0]  %s445, 128, %s442, %s431
        $region56: #{tpu_custom_call.1} parent=31 // pred_fallthru
          _
      $region32: #{tpu_custom_call.1} parent=5 // pred_fallthru
        _
      %p448 = scmp.le.s32.totalorder 2, %s15
      // Predicated region
      $region57: #{tpu_custom_call.1} parent=5 // pred_check
        %p449 = pneg %p448
      $region58: #{tpu_custom_call.1} parent=5 // pred_check_branch
        %451 = sbr.rel (%p449) target = $region60
      $region59: #{tpu_custom_call.1} parent=5 // pred_region
        %s452 = ssub.s32 %s15, 2
        // Predicated region
        $region61: #{tpu_custom_call.1} parent=59 // pred_check
          %p453 = pneg %p158
        $region62: #{tpu_custom_call.1} parent=59 // pred_check_branch
          %455 = sbr.rel (%p453) target = $region64
        $region63: #{tpu_custom_call.1} parent=59 // pred_region
          %s456 = sand.u32 %s143, 1
          %s457 = scalar_lea.sflag [#allocation5], %s456
          %s458 = sand.u32 %s143, 1
          %s459 = smul.addr %s458, 8
          %s460 = scalar_lea.vmem [#allocation6], %s459
          %461 = dma.done %s457, 128
        $region64: #{tpu_custom_call.1} parent=59 // pred_fallthru
          _
      $region60: #{tpu_custom_call.1} parent=5 // pred_fallthru
        _
    $region6: #{tpu_custom_call.1} parent=1 // loop_footer
      %s19 = sadd.s32 1, %s15
    $region7: #{tpu_custom_call.1} parent=1 // loop_footer_branch
      %14 = sbr.rel target = $region3
    $region8: #{tpu_custom_call.1} parent=1 // loop_exit
      _
    %462 = vsyncpa [#allocation4], 1
    %s463 = scalar_lea.sflag [#allocation4], 1
    %464 = vsyncpa %s463, 1
    %465 = vsyncpa [#allocation5], 1
    %s466 = scalar_lea.sflag [#allocation5], 1
    %467 = vsyncpa %s466, 1

</llo_original>
